<compile_context>
chip_gen: v5e
topology: v5e:2x2
jax: 0.10.0
libtpu: 0.0.40
codegen_flags: <defaults>
</compile_context>

<pallas_src>
import jax
import jax.numpy as jnp
import numpy as np
from jax.experimental import pallas as pl
from jax.experimental.pallas import tpu as pltpu


def _flip(v, axis):
    """Reverse a 2-D value along `axis`, entirely in vregs.

    Built from broadcasted_iota + select + static slices: pure data movement,
    bit-exact for any 32-bit payload (so the int32 label bits survive the f32/
    i32 container untouched).  One final full-tile store is issued by the
    caller instead of per-row masked stores.
    """
    n = v.shape[axis]
    idx = jax.lax.broadcasted_iota(jnp.int32, v.shape, axis)
    out = v
    for i in range(n):
        src = jax.lax.slice_in_dim(v, n - 1 - i, n - i, axis=axis)
        out = jnp.where(idx == i, src, out)
    return out


def _rot90_kernel(k_ref, x_ref, o_ref):
    """Rotate one (H, W) channel slice by k*90 degrees (k is a prefetched scalar).

    Exactly one branch executes per call; every branch reads only x_ref,
    computes the rotated tile fully in vregs, and issues ONE full-tile store.
    """
    k = k_ref[0]
    v = x_ref[0]                                   # (H, W)

    @pl.when(k == 0)                               # identity: plain block copy
    def _():
        o_ref[0] = v

    @pl.when(k == 1)                               # 90 CCW: flip rows of v^T
    def _():
        o_ref[0] = _flip(v.T, axis=0)

    @pl.when(k == 2)                               # 180: flip both axes, no transpose
    def _():
        o_ref[0] = _flip(_flip(v, axis=1), axis=0)

    @pl.when(k == 3)                               # 270: flip cols of v^T
    def _():
        o_ref[0] = _flip(v.T, axis=1)


def rot90_pallas(x, k):
    """torch.rot90(x, k, dims=[1, 2]) for a (C, H, W) array, H == W, any dtype."""
    c, h, w = x.shape
    assert h == w, "square spatial dims required (odd k keeps the shape)"

    k_arr = jnp.asarray(k, jnp.int32).reshape((1,)) % 4
    spec = pl.BlockSpec((1, h, w), lambda i, kr: (i, 0, 0))

    return pl.pallas_call(
        _rot90_kernel,
        out_shape=jax.ShapeDtypeStruct(x.shape, x.dtype),
        grid_spec=pltpu.PrefetchScalarGridSpec(
            num_scalar_prefetch=1,
            grid=(c,),
            in_specs=[spec],
            out_specs=spec,
        ),
        compiler_params=pltpu.CompilerParams(
            dimension_semantics=("parallel",),
            vmem_limit_bytes=32 * 1024 * 1024,
        ),
    )(k_arr, x)


def rot90_image_label(image, label, k):
    """Apply the same k*90-degree rotation to image (C,H,W) and label (C',H,W).

    When both dtypes are 32-bit the two tensors are bitcast into one int32
    container and rotated in a single fused pallas_call (one launch, one
    channel grid); the kernel never does arithmetic, so the bitcast is exact.
    """
    if (image.dtype.itemsize == 4 and label.dtype.itemsize == 4
            and image.shape[1:] == label.shape[1:]):
        ci = image.shape[0]
        img_bits = jax.lax.bitcast_convert_type(image, jnp.int32)
        lbl_bits = jax.lax.bitcast_convert_type(label, jnp.int32)
        fused = jnp.concatenate([img_bits, lbl_bits], axis=0)
        out = rot90_pallas(fused, k)
        img_out = jax.lax.bitcast_convert_type(out[:ci], image.dtype)
        lbl_out = jax.lax.bitcast_convert_type(out[ci:], label.dtype)
        return img_out, lbl_out
    # Fallback (mismatched widths): two separate calls, same k.
    return rot90_pallas(image, k), rot90_pallas(label, k)


def random_rotation90(sample, key, p=0.5):
    """JAX equivalent of RandomRotation90.forward: with probability p, rotate
    both 'image' and 'label' by the same random multiple of 90 degrees."""
    k_apply, k_rot = jax.random.split(key)
    apply = jax.random.uniform(k_apply, ()) < p           # torch.rand(1) < p
    rot_times = jax.random.randint(k_rot, (), 0, 4)       # numpy randint(0,4): {0..3}
    k_eff = jnp.where(apply, rot_times, 0).astype(jnp.int32)
    img, lbl = rot90_image_label(sample["image"], sample["label"], k_eff)
    return {"image": img, "label": lbl}


if __name__ == "__main__":
    key = jax.random.PRNGKey(0)
    k_img, k_lbl, k_tf = jax.random.split(key, 3)

    C, H, W = 4, 16, 16
    image = jax.random.normal(k_img, (C, H, W), dtype=jnp.float32)
    label = jax.random.randint(k_lbl, (1, H, W), 0, 4).astype(jnp.int32)
    sample = {"image": image, "label": label}

    # Correctness of the fused kernel for every rotation count (bit-exact:
    # the rotation is a pure permutation, no arithmetic on the data).
    for k in range(4):
        img_r, lbl_r = rot90_image_label(image, label, k)
        jax.block_until_ready(img_r)
        jax.block_until_ready(lbl_r)
        ref_i = jnp.rot90(image, k, axes=(1, 2))
        ref_l = jnp.rot90(label, k, axes=(1, 2))
        assert np.array_equal(np.asarray(img_r), np.asarray(ref_i)), k
        assert np.array_equal(np.asarray(lbl_r), np.asarray(ref_l)), k

    # Full random transform (probabilistic apply + random k), as in the module.
    out = random_rotation90(sample, k_tf, p=0.5)
    jax.block_until_ready(out["image"])
    jax.block_until_ready(out["label"])

    print("KERNEL_OK")
</pallas_src>

<mosaic_0001>
module attributes {stable_mosaic.version = 11 : i64} {
  func.func @_rot90_kernel(%arg0: i32, %arg1: memref<1xi32, #tpu.memory_space<smem>>, %arg2: memref<1x16x16xi32, #tpu.memory_space<vmem>>, %arg3: memref<1x16x16xi32, #tpu.memory_space<vmem>>) attributes {dimension_semantics = [#tpu.dimension_semantics<parallel>], iteration_bounds = array<i64: 5>, scalar_prefetch = 1 : i64, scratch_operands = 0 : i64, tpu.core_type = #tpu.core_type<tc>, window_params = [{transform_indices = @transform_0, window_bounds = array<i64: 1, 16, 16>}, {transform_indices = @transform_1, window_bounds = array<i64: 1, 16, 16>}]} {
    %c0 = arith.constant 0 : index
    %0 = memref.load %arg1[%c0] : memref<1xi32, #tpu.memory_space<smem>>
    %c0_0 = arith.constant 0 : index
    %c0_1 = arith.constant 0 : index
    %c0_2 = arith.constant 0 : index
    %1 = vector.load %arg2[%c0_0, %c0_1, %c0_2] : memref<1x16x16xi32, #tpu.memory_space<vmem>>, vector<1x16x16xi32>
    %2 = vector.shape_cast %1 : vector<1x16x16xi32> to vector<16x16xi32>
    %c0_i32 = arith.constant 0 : i32
    %3 = arith.cmpi eq, %0, %c0_i32 : i32
    %4 = arith.extui %3 : i1 to i32
    %c0_i32_3 = arith.constant 0 : i32
    %5 = arith.cmpi ne, %4, %c0_i32_3 : i32
    scf.if %5 {
      %c0_7 = arith.constant 0 : index
      %c0_8 = arith.constant 0 : index
      %c0_9 = arith.constant 0 : index
      %15 = vector.load %arg3[%c0_7, %c0_8, %c0_9] : memref<1x16x16xi32, #tpu.memory_space<vmem>>, vector<1x16x16xi32>
      %16 = vector.shape_cast %15 : vector<1x16x16xi32> to vector<16x16xi32>
      %17 = vector.shape_cast %2 : vector<16x16xi32> to vector<1x16x16xi32>
      tpu.vector_store %arg3[%c0_7, %c0_8, %c0_9], %17 {strides = array<i32>} : memref<1x16x16xi32, #tpu.memory_space<vmem>>, vector<1x16x16xi32>,
    } else {
    }
    %c1_i32 = arith.constant 1 : i32
    %6 = arith.cmpi eq, %0, %c1_i32 : i32
    %7 = arith.extui %6 : i1 to i32
    %c0_i32_4 = arith.constant 0 : i32
    %8 = arith.cmpi ne, %7, %c0_i32_4 : i32
    scf.if %8 {
      %15 = tpu.transpose %2, [1, 0] : vector<16x16xi32> -> vector<16x16xi32>
      %16 = tpu.iota {dimensions = array<i32: 0>} : vector<16x16xi32>
      %17 = vector.extract_strided_slice %15 {offsets = [15, 0], sizes = [1, 16], strides = [1, 1]} : vector<16x16xi32> to vector<1x16xi32>
      %c0_i32_7 = arith.constant 0 : i32
      %18 = vector.broadcast %c0_i32_7 : i32 to vector<16x16xi32>
      %19 = arith.cmpi eq, %16, %18 : vector<16x16xi32>
      %20 = vector.shape_cast %17 : vector<1x16xi32> to vector<1x16xi32>
      %21 = vector.broadcast %20 : vector<1x16xi32> to vector<16x16xi32>
      %22 = arith.select %19, %21, %15 : vector<16x16xi1>, vector<16x16xi32>
      %23 = vector.extract_strided_slice %15 {offsets = [14, 0], sizes = [1, 16], strides = [1, 1]} : vector<16x16xi32> to vector<1x16xi32>
      %c1_i32_8 = arith.constant 1 : i32
      %24 = vector.broadcast %c1_i32_8 : i32 to vector<16x16xi32>
      %25 = arith.cmpi eq, %16, %24 : vector<16x16xi32>
      %26 = vector.shape_cast %23 : vector<1x16xi32> to vector<1x16xi32>
      %27 = vector.broadcast %26 : vector<1x16xi32> to vector<16x16xi32>
      %28 = arith.select %25, %27, %22 : vector<16x16xi1>, vector<16x16xi32>
      %29 = vector.extract_strided_slice %15 {offsets = [13, 0], sizes = [1, 16], strides = [1, 1]} : vector<16x16xi32> to vector<1x16xi32>
      %c2_i32_9 = arith.constant 2 : i32
      %30 = vector.broadcast %c2_i32_9 : i32 to vector<16x16xi32>
      %31 = arith.cmpi eq, %16, %30 : vector<16x16xi32>
      %32 = vector.shape_cast %29 : vector<1x16xi32> to vector<1x16xi32>
      %33 = vector.broadcast %32 : vector<1x16xi32> to vector<16x16xi32>
      %34 = arith.select %31, %33, %28 : vector<16x16xi1>, vector<16x16xi32>
      %35 = vector.extract_strided_slice %15 {offsets = [12, 0], sizes = [1, 16], strides = [1, 1]} : vector<16x16xi32> to vector<1x16xi32>
      %c3_i32_10 = arith.constant 3 : i32
      %36 = vector.broadcast %c3_i32_10 : i32 to vector<16x16xi32>
      %37 = arith.cmpi eq, %16, %36 : vector<16x16xi32>
      %38 = vector.shape_cast %35 : vector<1x16xi32> to vector<1x16xi32>
      %39 = vector.broadcast %38 : vector<1x16xi32> to vector<16x16xi32>
      %40 = arith.select %37, %39, %34 : vector<16x16xi1>, vector<16x16xi32>
      %41 = vector.extract_strided_slice %15 {offsets = [11, 0], sizes = [1, 16], strides = [1, 1]} : vector<16x16xi32> to vector<1x16xi32>
      %c4_i32 = arith.constant 4 : i32
      %42 = vector.broadcast %c4_i32 : i32 to vector<16x16xi32>
      %43 = arith.cmpi eq, %16, %42 : vector<16x16xi32>
      %44 = vector.shape_cast %41 : vector<1x16xi32> to vector<1x16xi32>
      %45 = vector.broadcast %44 : vector<1x16xi32> to vector<16x16xi32>
      %46 = arith.select %43, %45, %40 : vector<16x16xi1>, vector<16x16xi32>
      %47 = vector.extract_strided_slice %15 {offsets = [10, 0], sizes = [1, 16], strides = [1, 1]} : vector<16x16xi32> to vector<1x16xi32>
      %c5_i32 = arith.constant 5 : i32
      %48 = vector.broadcast %c5_i32 : i32 to vector<16x16xi32>
      %49 = arith.cmpi eq, %16, %48 : vector<16x16xi32>
      %50 = vector.shape_cast %47 : vector<1x16xi32> to vector<1x16xi32>
      %51 = vector.broadcast %50 : vector<1x16xi32> to vector<16x16xi32>
      %52 = arith.select %49, %51, %46 : vector<16x16xi1>, vector<16x16xi32>
      %53 = vector.extract_strided_slice %15 {offsets = [9, 0], sizes = [1, 16], strides = [1, 1]} : vector<16x16xi32> to vector<1x16xi32>
      %c6_i32 = arith.constant 6 : i32
      %54 = vector.broadcast %c6_i32 : i32 to vector<16x16xi32>
      %55 = arith.cmpi eq, %16, %54 : vector<16x16xi32>
      %56 = vector.shape_cast %53 : vector<1x16xi32> to vector<1x16xi32>
      %57 = vector.broadcast %56 : vector<1x16xi32> to vector<16x16xi32>
      %58 = arith.select %55, %57, %52 : vector<16x16xi1>, vector<16x16xi32>
      %59 = vector.extract_strided_slice %15 {offsets = [8, 0], sizes = [1, 16], strides = [1, 1]} : vector<16x16xi32> to vector<1x16xi32>
      %c7_i32 = arith.constant 7 : i32
      %60 = vector.broadcast %c7_i32 : i32 to vector<16x16xi32>
      %61 = arith.cmpi eq, %16, %60 : vector<16x16xi32>
      %62 = vector.shape_cast %59 : vector<1x16xi32> to vector<1x16xi32>
      %63 = vector.broadcast %62 : vector<1x16xi32> to vector<16x16xi32>
      %64 = arith.select %61, %63, %58 : vector<16x16xi1>, vector<16x16xi32>
      %65 = vector.extract_strided_slice %15 {offsets = [7, 0], sizes = [1, 16], strides = [1, 1]} : vector<16x16xi32> to vector<1x16xi32>
      %c8_i32 = arith.constant 8 : i32
      %66 = vector.broadcast %c8_i32 : i32 to vector<16x16xi32>
      %67 = arith.cmpi eq, %16, %66 : vector<16x16xi32>
      %68 = vector.shape_cast %65 : vector<1x16xi32> to vector<1x16xi32>
      %69 = vector.broadcast %68 : vector<1x16xi32> to vector<16x16xi32>
      %70 = arith.select %67, %69, %64 : vector<16x16xi1>, vector<16x16xi32>
      %71 = vector.extract_strided_slice %15 {offsets = [6, 0], sizes = [1, 16], strides = [1, 1]} : vector<16x16xi32> to vector<1x16xi32>
      %c9_i32 = arith.constant 9 : i32
      %72 = vector.broadcast %c9_i32 : i32 to vector<16x16xi32>
      %73 = arith.cmpi eq, %16, %72 : vector<16x16xi32>
      %74 = vector.shape_cast %71 : vector<1x16xi32> to vector<1x16xi32>
      %75 = vector.broadcast %74 : vector<1x16xi32> to vector<16x16xi32>
      %76 = arith.select %73, %75, %70 : vector<16x16xi1>, vector<16x16xi32>
      %77 = vector.extract_strided_slice %15 {offsets = [5, 0], sizes = [1, 16], strides = [1, 1]} : vector<16x16xi32> to vector<1x16xi32>
      %c10_i32 = arith.constant 10 : i32
      %78 = vector.broadcast %c10_i32 : i32 to vector<16x16xi32>
      %79 = arith.cmpi eq, %16, %78 : vector<16x16xi32>
      %80 = vector.shape_cast %77 : vector<1x16xi32> to vector<1x16xi32>
      %81 = vector.broadcast %80 : vector<1x16xi32> to vector<16x16xi32>
      %82 = arith.select %79, %81, %76 : vector<16x16xi1>, vector<16x16xi32>
      %83 = vector.extract_strided_slice %15 {offsets = [4, 0], sizes = [1, 16], strides = [1, 1]} : vector<16x16xi32> to vector<1x16xi32>
      %c11_i32 = arith.constant 11 : i32
      %84 = vector.broadcast %c11_i32 : i32 to vector<16x16xi32>
      %85 = arith.cmpi eq, %16, %84 : vector<16x16xi32>
      %86 = vector.shape_cast %83 : vector<1x16xi32> to vector<1x16xi32>
      %87 = vector.broadcast %86 : vector<1x16xi32> to vector<16x16xi32>
      %88 = arith.select %85, %87, %82 : vector<16x16xi1>, vector<16x16xi32>
      %89 = vector.extract_strided_slice %15 {offsets = [3, 0], sizes = [1, 16], strides = [1, 1]} : vector<16x16xi32> to vector<1x16xi32>
      %c12_i32 = arith.constant 12 : i32
      %90 = vector.broadcast %c12_i32 : i32 to vector<16x16xi32>
      %91 = arith.cmpi eq, %16, %90 : vector<16x16xi32>
      %92 = vector.shape_cast %89 : vector<1x16xi32> to vector<1x16xi32>
      %93 = vector.broadcast %92 : vector<1x16xi32> to vector<16x16xi32>
      %94 = arith.select %91, %93, %88 : vector<16x16xi1>, vector<16x16xi32>
      %95 = vector.extract_strided_slice %15 {offsets = [2, 0], sizes = [1, 16], strides = [1, 1]} : vector<16x16xi32> to vector<1x16xi32>
      %c13_i32 = arith.constant 13 : i32
      %96 = vector.broadcast %c13_i32 : i32 to vector<16x16xi32>
      %97 = arith.cmpi eq, %16, %96 : vector<16x16xi32>
      %98 = vector.shape_cast %95 : vector<1x16xi32> to vector<1x16xi32>
      %99 = vector.broadcast %98 : vector<1x16xi32> to vector<16x16xi32>
      %100 = arith.select %97, %99, %94 : vector<16x16xi1>, vector<16x16xi32>
      %101 = vector.extract_strided_slice %15 {offsets = [1, 0], sizes = [1, 16], strides = [1, 1]} : vector<16x16xi32> to vector<1x16xi32>
      %c14_i32 = arith.constant 14 : i32
      %102 = vector.broadcast %c14_i32 : i32 to vector<16x16xi32>
      %103 = arith.cmpi eq, %16, %102 : vector<16x16xi32>
      %104 = vector.shape_cast %101 : vector<1x16xi32> to vector<1x16xi32>
      %105 = vector.broadcast %104 : vector<1x16xi32> to vector<16x16xi32>
      %106 = arith.select %103, %105, %100 : vector<16x16xi1>, vector<16x16xi32>
      %107 = vector.extract_strided_slice %15 {offsets = [0, 0], sizes = [1, 16], strides = [1, 1]} : vector<16x16xi32> to vector<1x16xi32>
      %c15_i32 = arith.constant 15 : i32
      %108 = vector.broadcast %c15_i32 : i32 to vector<16x16xi32>
      %109 = arith.cmpi eq, %16, %108 : vector<16x16xi32>
      %110 = vector.shape_cast %107 : vector<1x16xi32> to vector<1x16xi32>
      %111 = vector.broadcast %110 : vector<1x16xi32> to vector<16x16xi32>
      %112 = arith.select %109, %111, %106 : vector<16x16xi1>, vector<16x16xi32>
      %c0_11 = arith.constant 0 : index
      %c0_12 = arith.constant 0 : index
      %c0_13 = arith.constant 0 : index
      %113 = vector.load %arg3[%c0_11, %c0_12, %c0_13] : memref<1x16x16xi32, #tpu.memory_space<vmem>>, vector<1x16x16xi32>
      %114 = vector.shape_cast %113 : vector<1x16x16xi32> to vector<16x16xi32>
      %115 = vector.shape_cast %112 : vector<16x16xi32> to vector<1x16x16xi32>
      tpu.vector_store %arg3[%c0_11, %c0_12, %c0_13], %115 {strides = array<i32>} : memref<1x16x16xi32, #tpu.memory_space<vmem>>, vector<1x16x16xi32>,
    } else {
    }
    %c2_i32 = arith.constant 2 : i32
    %9 = arith.cmpi eq, %0, %c2_i32 : i32
    %10 = arith.extui %9 : i1 to i32
    %c0_i32_5 = arith.constant 0 : i32
    %11 = arith.cmpi ne, %10, %c0_i32_5 : i32
    scf.if %11 {
      %15 = tpu.iota {dimensions = array<i32: 1>} : vector<16x16xi32>
      %16 = vector.extract_strided_slice %2 {offsets = [0, 15], sizes = [16, 1], strides = [1, 1]} : vector<16x16xi32> to vector<16x1xi32>
      %c0_i32_7 = arith.constant 0 : i32
      %17 = vector.broadcast %c0_i32_7 : i32 to vector<16x16xi32>
      %18 = arith.cmpi eq, %15, %17 : vector<16x16xi32>
      %19 = vector.shape_cast %16 : vector<16x1xi32> to vector<16x1xi32>
      %20 = vector.broadcast %19 : vector<16x1xi32> to vector<16x16xi32>
      %21 = arith.select %18, %20, %2 : vector<16x16xi1>, vector<16x16xi32>
      %22 = vector.extract_strided_slice %2 {offsets = [0, 14], sizes = [16, 1], strides = [1, 1]} : vector<16x16xi32> to vector<16x1xi32>
      %c1_i32_8 = arith.constant 1 : i32
      %23 = vector.broadcast %c1_i32_8 : i32 to vector<16x16xi32>
      %24 = arith.cmpi eq, %15, %23 : vector<16x16xi32>
      %25 = vector.shape_cast %22 : vector<16x1xi32> to vector<16x1xi32>
      %26 = vector.broadcast %25 : vector<16x1xi32> to vector<16x16xi32>
      %27 = arith.select %24, %26, %21 : vector<16x16xi1>, vector<16x16xi32>
      %28 = vector.extract_strided_slice %2 {offsets = [0, 13], sizes = [16, 1], strides = [1, 1]} : vector<16x16xi32> to vector<16x1xi32>
      %c2_i32_9 = arith.constant 2 : i32
      %29 = vector.broadcast %c2_i32_9 : i32 to vector<16x16xi32>
      %30 = arith.cmpi eq, %15, %29 : vector<16x16xi32>
      %31 = vector.shape_cast %28 : vector<16x1xi32> to vector<16x1xi32>
      %32 = vector.broadcast %31 : vector<16x1xi32> to vector<16x16xi32>
      %33 = arith.select %30, %32, %27 : vector<16x16xi1>, vector<16x16xi32>
      %34 = vector.extract_strided_slice %2 {offsets = [0, 12], sizes = [16, 1], strides = [1, 1]} : vector<16x16xi32> to vector<16x1xi32>
      %c3_i32_10 = arith.constant 3 : i32
      %35 = vector.broadcast %c3_i32_10 : i32 to vector<16x16xi32>
      %36 = arith.cmpi eq, %15, %35 : vector<16x16xi32>
      %37 = vector.shape_cast %34 : vector<16x1xi32> to vector<16x1xi32>
      %38 = vector.broadcast %37 : vector<16x1xi32> to vector<16x16xi32>
      %39 = arith.select %36, %38, %33 : vector<16x16xi1>, vector<16x16xi32>
      %40 = vector.extract_strided_slice %2 {offsets = [0, 11], sizes = [16, 1], strides = [1, 1]} : vector<16x16xi32> to vector<16x1xi32>
      %c4_i32 = arith.constant 4 : i32
      %41 = vector.broadcast %c4_i32 : i32 to vector<16x16xi32>
      %42 = arith.cmpi eq, %15, %41 : vector<16x16xi32>
      %43 = vector.shape_cast %40 : vector<16x1xi32> to vector<16x1xi32>
      %44 = vector.broadcast %43 : vector<16x1xi32> to vector<16x16xi32>
      %45 = arith.select %42, %44, %39 : vector<16x16xi1>, vector<16x16xi32>
      %46 = vector.extract_strided_slice %2 {offsets = [0, 10], sizes = [16, 1], strides = [1, 1]} : vector<16x16xi32> to vector<16x1xi32>
      %c5_i32 = arith.constant 5 : i32
      %47 = vector.broadcast %c5_i32 : i32 to vector<16x16xi32>
      %48 = arith.cmpi eq, %15, %47 : vector<16x16xi32>
      %49 = vector.shape_cast %46 : vector<16x1xi32> to vector<16x1xi32>
      %50 = vector.broadcast %49 : vector<16x1xi32> to vector<16x16xi32>
      %51 = arith.select %48, %50, %45 : vector<16x16xi1>, vector<16x16xi32>
      %52 = vector.extract_strided_slice %2 {offsets = [0, 9], sizes = [16, 1], strides = [1, 1]} : vector<16x16xi32> to vector<16x1xi32>
      %c6_i32 = arith.constant 6 : i32
      %53 = vector.broadcast %c6_i32 : i32 to vector<16x16xi32>
      %54 = arith.cmpi eq, %15, %53 : vector<16x16xi32>
      %55 = vector.shape_cast %52 : vector<16x1xi32> to vector<16x1xi32>
      %56 = vector.broadcast %55 : vector<16x1xi32> to vector<16x16xi32>
      %57 = arith.select %54, %56, %51 : vector<16x16xi1>, vector<16x16xi32>
      %58 = vector.extract_strided_slice %2 {offsets = [0, 8], sizes = [16, 1], strides = [1, 1]} : vector<16x16xi32> to vector<16x1xi32>
      %c7_i32 = arith.constant 7 : i32
      %59 = vector.broadcast %c7_i32 : i32 to vector<16x16xi32>
      %60 = arith.cmpi eq, %15, %59 : vector<16x16xi32>
      %61 = vector.shape_cast %58 : vector<16x1xi32> to vector<16x1xi32>
      %62 = vector.broadcast %61 : vector<16x1xi32> to vector<16x16xi32>
      %63 = arith.select %60, %62, %57 : vector<16x16xi1>, vector<16x16xi32>
      %64 = vector.extract_strided_slice %2 {offsets = [0, 7], sizes = [16, 1], strides = [1, 1]} : vector<16x16xi32> to vector<16x1xi32>
      %c8_i32 = arith.constant 8 : i32
      %65 = vector.broadcast %c8_i32 : i32 to vector<16x16xi32>
      %66 = arith.cmpi eq, %15, %65 : vector<16x16xi32>
      %67 = vector.shape_cast %64 : vector<16x1xi32> to vector<16x1xi32>
      %68 = vector.broadcast %67 : vector<16x1xi32> to vector<16x16xi32>
      %69 = arith.select %66, %68, %63 : vector<16x16xi1>, vector<16x16xi32>
      %70 = vector.extract_strided_slice %2 {offsets = [0, 6], sizes = [16, 1], strides = [1, 1]} : vector<16x16xi32> to vector<16x1xi32>
      %c9_i32 = arith.constant 9 : i32
      %71 = vector.broadcast %c9_i32 : i32 to vector<16x16xi32>
      %72 = arith.cmpi eq, %15, %71 : vector<16x16xi32>
      %73 = vector.shape_cast %70 : vector<16x1xi32> to vector<16x1xi32>
      %74 = vector.broadcast %73 : vector<16x1xi32> to vector<16x16xi32>
      %75 = arith.select %72, %74, %69 : vector<16x16xi1>, vector<16x16xi32>
      %76 = vector.extract_strided_slice %2 {offsets = [0, 5], sizes = [16, 1], strides = [1, 1]} : vector<16x16xi32> to vector<16x1xi32>
      %c10_i32 = arith.constant 10 : i32
      %77 = vector.broadcast %c10_i32 : i32 to vector<16x16xi32>
      %78 = arith.cmpi eq, %15, %77 : vector<16x16xi32>
      %79 = vector.shape_cast %76 : vector<16x1xi32> to vector<16x1xi32>
      %80 = vector.broadcast %79 : vector<16x1xi32> to vector<16x16xi32>
      %81 = arith.select %78, %80, %75 : vector<16x16xi1>, vector<16x16xi32>
      %82 = vector.extract_strided_slice %2 {offsets = [0, 4], sizes = [16, 1], strides = [1, 1]} : vector<16x16xi32> to vector<16x1xi32>
      %c11_i32 = arith.constant 11 : i32
      %83 = vector.broadcast %c11_i32 : i32 to vector<16x16xi32>
      %84 = arith.cmpi eq, %15, %83 : vector<16x16xi32>
      %85 = vector.shape_cast %82 : vector<16x1xi32> to vector<16x1xi32>
      %86 = vector.broadcast %85 : vector<16x1xi32> to vector<16x16xi32>
      %87 = arith.select %84, %86, %81 : vector<16x16xi1>, vector<16x16xi32>
      %88 = vector.extract_strided_slice %2 {offsets = [0, 3], sizes = [16, 1], strides = [1, 1]} : vector<16x16xi32> to vector<16x1xi32>
      %c12_i32 = arith.constant 12 : i32
      %89 = vector.broadcast %c12_i32 : i32 to vector<16x16xi32>
      %90 = arith.cmpi eq, %15, %89 : vector<16x16xi32>
      %91 = vector.shape_cast %88 : vector<16x1xi32> to vector<16x1xi32>
      %92 = vector.broadcast %91 : vector<16x1xi32> to vector<16x16xi32>
      %93 = arith.select %90, %92, %87 : vector<16x16xi1>, vector<16x16xi32>
      %94 = vector.extract_strided_slice %2 {offsets = [0, 2], sizes = [16, 1], strides = [1, 1]} : vector<16x16xi32> to vector<16x1xi32>
      %c13_i32 = arith.constant 13 : i32
      %95 = vector.broadcast %c13_i32 : i32 to vector<16x16xi32>
      %96 = arith.cmpi eq, %15, %95 : vector<16x16xi32>
      %97 = vector.shape_cast %94 : vector<16x1xi32> to vector<16x1xi32>
      %98 = vector.broadcast %97 : vector<16x1xi32> to vector<16x16xi32>
      %99 = arith.select %96, %98, %93 : vector<16x16xi1>, vector<16x16xi32>
      %100 = vector.extract_strided_slice %2 {offsets = [0, 1], sizes = [16, 1], strides = [1, 1]} : vector<16x16xi32> to vector<16x1xi32>
      %c14_i32 = arith.constant 14 : i32
      %101 = vector.broadcast %c14_i32 : i32 to vector<16x16xi32>
      %102 = arith.cmpi eq, %15, %101 : vector<16x16xi32>
      %103 = vector.shape_cast %100 : vector<16x1xi32> to vector<16x1xi32>
      %104 = vector.broadcast %103 : vector<16x1xi32> to vector<16x16xi32>
      %105 = arith.select %102, %104, %99 : vector<16x16xi1>, vector<16x16xi32>
      %106 = vector.extract_strided_slice %2 {offsets = [0, 0], sizes = [16, 1], strides = [1, 1]} : vector<16x16xi32> to vector<16x1xi32>
      %c15_i32 = arith.constant 15 : i32
      %107 = vector.broadcast %c15_i32 : i32 to vector<16x16xi32>
      %108 = arith.cmpi eq, %15, %107 : vector<16x16xi32>
      %109 = vector.shape_cast %106 : vector<16x1xi32> to vector<16x1xi32>
      %110 = vector.broadcast %109 : vector<16x1xi32> to vector<16x16xi32>
      %111 = arith.select %108, %110, %105 : vector<16x16xi1>, vector<16x16xi32>
      %112 = tpu.iota {dimensions = array<i32: 0>} : vector<16x16xi32>
      %113 = vector.extract_strided_slice %111 {offsets = [15, 0], sizes = [1, 16], strides = [1, 1]} : vector<16x16xi32> to vector<1x16xi32>
      %c0_i32_11 = arith.constant 0 : i32
      %114 = vector.broadcast %c0_i32_11 : i32 to vector<16x16xi32>
      %115 = arith.cmpi eq, %112, %114 : vector<16x16xi32>
      %116 = vector.shape_cast %113 : vector<1x16xi32> to vector<1x16xi32>
      %117 = vector.broadcast %116 : vector<1x16xi32> to vector<16x16xi32>
      %118 = arith.select %115, %117, %111 : vector<16x16xi1>, vector<16x16xi32>
      %119 = vector.extract_strided_slice %111 {offsets = [14, 0], sizes = [1, 16], strides = [1, 1]} : vector<16x16xi32> to vector<1x16xi32>
      %c1_i32_12 = arith.constant 1 : i32
      %120 = vector.broadcast %c1_i32_12 : i32 to vector<16x16xi32>
      %121 = arith.cmpi eq, %112, %120 : vector<16x16xi32>
      %122 = vector.shape_cast %119 : vector<1x16xi32> to vector<1x16xi32>
      %123 = vector.broadcast %122 : vector<1x16xi32> to vector<16x16xi32>
      %124 = arith.select %121, %123, %118 : vector<16x16xi1>, vector<16x16xi32>
      %125 = vector.extract_strided_slice %111 {offsets = [13, 0], sizes = [1, 16], strides = [1, 1]} : vector<16x16xi32> to vector<1x16xi32>
      %c2_i32_13 = arith.constant 2 : i32
      %126 = vector.broadcast %c2_i32_13 : i32 to vector<16x16xi32>
      %127 = arith.cmpi eq, %112, %126 : vector<16x16xi32>
      %128 = vector.shape_cast %125 : vector<1x16xi32> to vector<1x16xi32>
      %129 = vector.broadcast %128 : vector<1x16xi32> to vector<16x16xi32>
      %130 = arith.select %127, %129, %124 : vector<16x16xi1>, vector<16x16xi32>
      %131 = vector.extract_strided_slice %111 {offsets = [12, 0], sizes = [1, 16], strides = [1, 1]} : vector<16x16xi32> to vector<1x16xi32>
      %c3_i32_14 = arith.constant 3 : i32
      %132 = vector.broadcast %c3_i32_14 : i32 to vector<16x16xi32>
      %133 = arith.cmpi eq, %112, %132 : vector<16x16xi32>
      %134 = vector.shape_cast %131 : vector<1x16xi32> to vector<1x16xi32>
      %135 = vector.broadcast %134 : vector<1x16xi32> to vector<16x16xi32>
      %136 = arith.select %133, %135, %130 : vector<16x16xi1>, vector<16x16xi32>
      %137 = vector.extract_strided_slice %111 {offsets = [11, 0], sizes = [1, 16], strides = [1, 1]} : vector<16x16xi32> to vector<1x16xi32>
      %c4_i32_15 = arith.constant 4 : i32
      %138 = vector.broadcast %c4_i32_15 : i32 to vector<16x16xi32>
      %139 = arith.cmpi eq, %112, %138 : vector<16x16xi32>
      %140 = vector.shape_cast %137 : vector<1x16xi32> to vector<1x16xi32>
      %141 = vector.broadcast %140 : vector<1x16xi32> to vector<16x16xi32>
      %142 = arith.select %139, %141, %136 : vector<16x16xi1>, vector<16x16xi32>
      %143 = vector.extract_strided_slice %111 {offsets = [10, 0], sizes = [1, 16], strides = [1, 1]} : vector<16x16xi32> to vector<1x16xi32>
      %c5_i32_16 = arith.constant 5 : i32
      %144 = vector.broadcast %c5_i32_16 : i32 to vector<16x16xi32>
      %145 = arith.cmpi eq, %112, %144 : vector<16x16xi32>
      %146 = vector.shape_cast %143 : vector<1x16xi32> to vector<1x16xi32>
      %147 = vector.broadcast %146 : vector<1x16xi32> to vector<16x16xi32>
      %148 = arith.select %145, %147, %142 : vector<16x16xi1>, vector<16x16xi32>
      %149 = vector.extract_strided_slice %111 {offsets = [9, 0], sizes = [1, 16], strides = [1, 1]} : vector<16x16xi32> to vector<1x16xi32>
      %c6_i32_17 = arith.constant 6 : i32
      %150 = vector.broadcast %c6_i32_17 : i32 to vector<16x16xi32>
      %151 = arith.cmpi eq, %112, %150 : vector<16x16xi32>
      %152 = vector.shape_cast %149 : vector<1x16xi32> to vector<1x16xi32>
      %153 = vector.broadcast %152 : vector<1x16xi32> to vector<16x16xi32>
      %154 = arith.select %151, %153, %148 : vector<16x16xi1>, vector<16x16xi32>
      %155 = vector.extract_strided_slice %111 {offsets = [8, 0], sizes = [1, 16], strides = [1, 1]} : vector<16x16xi32> to vector<1x16xi32>
      %c7_i32_18 = arith.constant 7 : i32
      %156 = vector.broadcast %c7_i32_18 : i32 to vector<16x16xi32>
      %157 = arith.cmpi eq, %112, %156 : vector<16x16xi32>
      %158 = vector.shape_cast %155 : vector<1x16xi32> to vector<1x16xi32>
      %159 = vector.broadcast %158 : vector<1x16xi32> to vector<16x16xi32>
      %160 = arith.select %157, %159, %154 : vector<16x16xi1>, vector<16x16xi32>
      %161 = vector.extract_strided_slice %111 {offsets = [7, 0], sizes = [1, 16], strides = [1, 1]} : vector<16x16xi32> to vector<1x16xi32>
      %c8_i32_19 = arith.constant 8 : i32
      %162 = vector.broadcast %c8_i32_19 : i32 to vector<16x16xi32>
      %163 = arith.cmpi eq, %112, %162 : vector<16x16xi32>
      %164 = vector.shape_cast %161 : vector<1x16xi32> to vector<1x16xi32>
      %165 = vector.broadcast %164 : vector<1x16xi32> to vector<16x16xi32>
      %166 = arith.select %163, %165, %160 : vector<16x16xi1>, vector<16x16xi32>
      %167 = vector.extract_strided_slice %111 {offsets = [6, 0], sizes = [1, 16], strides = [1, 1]} : vector<16x16xi32> to vector<1x16xi32>
      %c9_i32_20 = arith.constant 9 : i32
      %168 = vector.broadcast %c9_i32_20 : i32 to vector<16x16xi32>
      %169 = arith.cmpi eq, %112, %168 : vector<16x16xi32>
      %170 = vector.shape_cast %167 : vector<1x16xi32> to vector<1x16xi32>
      %171 = vector.broadcast %170 : vector<1x16xi32> to vector<16x16xi32>
      %172 = arith.select %169, %171, %166 : vector<16x16xi1>, vector<16x16xi32>
      %173 = vector.extract_strided_slice %111 {offsets = [5, 0], sizes = [1, 16], strides = [1, 1]} : vector<16x16xi32> to vector<1x16xi32>
      %c10_i32_21 = arith.constant 10 : i32
      %174 = vector.broadcast %c10_i32_21 : i32 to vector<16x16xi32>
      %175 = arith.cmpi eq, %112, %174 : vector<16x16xi32>
      %176 = vector.shape_cast %173 : vector<1x16xi32> to vector<1x16xi32>
      %177 = vector.broadcast %176 : vector<1x16xi32> to vector<16x16xi32>
      %178 = arith.select %175, %177, %172 : vector<16x16xi1>, vector<16x16xi32>
      %179 = vector.extract_strided_slice %111 {offsets = [4, 0], sizes = [1, 16], strides = [1, 1]} : vector<16x16xi32> to vector<1x16xi32>
      %c11_i32_22 = arith.constant 11 : i32
      %180 = vector.broadcast %c11_i32_22 : i32 to vector<16x16xi32>
      %181 = arith.cmpi eq, %112, %180 : vector<16x16xi32>
      %182 = vector.shape_cast %179 : vector<1x16xi32> to vector<1x16xi32>
      %183 = vector.broadcast %182 : vector<1x16xi32> to vector<16x16xi32>
      %184 = arith.select %181, %183, %178 : vector<16x16xi1>, vector<16x16xi32>
      %185 = vector.extract_strided_slice %111 {offsets = [3, 0], sizes = [1, 16], strides = [1, 1]} : vector<16x16xi32> to vector<1x16xi32>
      %c12_i32_23 = arith.constant 12 : i32
      %186 = vector.broadcast %c12_i32_23 : i32 to vector<16x16xi32>
      %187 = arith.cmpi eq, %112, %186 : vector<16x16xi32>
      %188 = vector.shape_cast %185 : vector<1x16xi32> to vector<1x16xi32>
      %189 = vector.broadcast %188 : vector<1x16xi32> to vector<16x16xi32>
      %190 = arith.select %187, %189, %184 : vector<16x16xi1>, vector<16x16xi32>
      %191 = vector.extract_strided_slice %111 {offsets = [2, 0], sizes = [1, 16], strides = [1, 1]} : vector<16x16xi32> to vector<1x16xi32>
      %c13_i32_24 = arith.constant 13 : i32
      %192 = vector.broadcast %c13_i32_24 : i32 to vector<16x16xi32>
      %193 = arith.cmpi eq, %112, %192 : vector<16x16xi32>
      %194 = vector.shape_cast %191 : vector<1x16xi32> to vector<1x16xi32>
      %195 = vector.broadcast %194 : vector<1x16xi32> to vector<16x16xi32>
      %196 = arith.select %193, %195, %190 : vector<16x16xi1>, vector<16x16xi32>
      %197 = vector.extract_strided_slice %111 {offsets = [1, 0], sizes = [1, 16], strides = [1, 1]} : vector<16x16xi32> to vector<1x16xi32>
      %c14_i32_25 = arith.constant 14 : i32
      %198 = vector.broadcast %c14_i32_25 : i32 to vector<16x16xi32>
      %199 = arith.cmpi eq, %112, %198 : vector<16x16xi32>
      %200 = vector.shape_cast %197 : vector<1x16xi32> to vector<1x16xi32>
      %201 = vector.broadcast %200 : vector<1x16xi32> to vector<16x16xi32>
      %202 = arith.select %199, %201, %196 : vector<16x16xi1>, vector<16x16xi32>
      %203 = vector.extract_strided_slice %111 {offsets = [0, 0], sizes = [1, 16], strides = [1, 1]} : vector<16x16xi32> to vector<1x16xi32>
      %c15_i32_26 = arith.constant 15 : i32
      %204 = vector.broadcast %c15_i32_26 : i32 to vector<16x16xi32>
      %205 = arith.cmpi eq, %112, %204 : vector<16x16xi32>
      %206 = vector.shape_cast %203 : vector<1x16xi32> to vector<1x16xi32>
      %207 = vector.broadcast %206 : vector<1x16xi32> to vector<16x16xi32>
      %208 = arith.select %205, %207, %202 : vector<16x16xi1>, vector<16x16xi32>
      %c0_27 = arith.constant 0 : index
      %c0_28 = arith.constant 0 : index
      %c0_29 = arith.constant 0 : index
      %209 = vector.load %arg3[%c0_27, %c0_28, %c0_29] : memref<1x16x16xi32, #tpu.memory_space<vmem>>, vector<1x16x16xi32>
      %210 = vector.shape_cast %209 : vector<1x16x16xi32> to vector<16x16xi32>
      %211 = vector.shape_cast %208 : vector<16x16xi32> to vector<1x16x16xi32>
      tpu.vector_store %arg3[%c0_27, %c0_28, %c0_29], %211 {strides = array<i32>} : memref<1x16x16xi32, #tpu.memory_space<vmem>>, vector<1x16x16xi32>,
    } else {
    }
    %c3_i32 = arith.constant 3 : i32
    %12 = arith.cmpi eq, %0, %c3_i32 : i32
    %13 = arith.extui %12 : i1 to i32
    %c0_i32_6 = arith.constant 0 : i32
    %14 = arith.cmpi ne, %13, %c0_i32_6 : i32
    scf.if %14 {
      %15 = tpu.transpose %2, [1, 0] : vector<16x16xi32> -> vector<16x16xi32>
      %16 = tpu.iota {dimensions = array<i32: 1>} : vector<16x16xi32>
      %17 = vector.extract_strided_slice %15 {offsets = [0, 15], sizes = [16, 1], strides = [1, 1]} : vector<16x16xi32> to vector<16x1xi32>
      %c0_i32_7 = arith.constant 0 : i32
      %18 = vector.broadcast %c0_i32_7 : i32 to vector<16x16xi32>
      %19 = arith.cmpi eq, %16, %18 : vector<16x16xi32>
      %20 = vector.shape_cast %17 : vector<16x1xi32> to vector<16x1xi32>
      %21 = vector.broadcast %20 : vector<16x1xi32> to vector<16x16xi32>
      %22 = arith.select %19, %21, %15 : vector<16x16xi1>, vector<16x16xi32>
      %23 = vector.extract_strided_slice %15 {offsets = [0, 14], sizes = [16, 1], strides = [1, 1]} : vector<16x16xi32> to vector<16x1xi32>
      %c1_i32_8 = arith.constant 1 : i32
      %24 = vector.broadcast %c1_i32_8 : i32 to vector<16x16xi32>
      %25 = arith.cmpi eq, %16, %24 : vector<16x16xi32>
      %26 = vector.shape_cast %23 : vector<16x1xi32> to vector<16x1xi32>
      %27 = vector.broadcast %26 : vector<16x1xi32> to vector<16x16xi32>
      %28 = arith.select %25, %27, %22 : vector<16x16xi1>, vector<16x16xi32>
      %29 = vector.extract_strided_slice %15 {offsets = [0, 13], sizes = [16, 1], strides = [1, 1]} : vector<16x16xi32> to vector<16x1xi32>
      %c2_i32_9 = arith.constant 2 : i32
      %30 = vector.broadcast %c2_i32_9 : i32 to vector<16x16xi32>
      %31 = arith.cmpi eq, %16, %30 : vector<16x16xi32>
      %32 = vector.shape_cast %29 : vector<16x1xi32> to vector<16x1xi32>
      %33 = vector.broadcast %32 : vector<16x1xi32> to vector<16x16xi32>
      %34 = arith.select %31, %33, %28 : vector<16x16xi1>, vector<16x16xi32>
      %35 = vector.extract_strided_slice %15 {offsets = [0, 12], sizes = [16, 1], strides = [1, 1]} : vector<16x16xi32> to vector<16x1xi32>
      %c3_i32_10 = arith.constant 3 : i32
      %36 = vector.broadcast %c3_i32_10 : i32 to vector<16x16xi32>
      %37 = arith.cmpi eq, %16, %36 : vector<16x16xi32>
      %38 = vector.shape_cast %35 : vector<16x1xi32> to vector<16x1xi32>
      %39 = vector.broadcast %38 : vector<16x1xi32> to vector<16x16xi32>
      %40 = arith.select %37, %39, %34 : vector<16x16xi1>, vector<16x16xi32>
      %41 = vector.extract_strided_slice %15 {offsets = [0, 11], sizes = [16, 1], strides = [1, 1]} : vector<16x16xi32> to vector<16x1xi32>
      %c4_i32 = arith.constant 4 : i32
      %42 = vector.broadcast %c4_i32 : i32 to vector<16x16xi32>
      %43 = arith.cmpi eq, %16, %42 : vector<16x16xi32>
      %44 = vector.shape_cast %41 : vector<16x1xi32> to vector<16x1xi32>
      %45 = vector.broadcast %44 : vector<16x1xi32> to vector<16x16xi32>
      %46 = arith.select %43, %45, %40 : vector<16x16xi1>, vector<16x16xi32>
      %47 = vector.extract_strided_slice %15 {offsets = [0, 10], sizes = [16, 1], strides = [1, 1]} : vector<16x16xi32> to vector<16x1xi32>
      %c5_i32 = arith.constant 5 : i32
      %48 = vector.broadcast %c5_i32 : i32 to vector<16x16xi32>
      %49 = arith.cmpi eq, %16, %48 : vector<16x16xi32>
      %50 = vector.shape_cast %47 : vector<16x1xi32> to vector<16x1xi32>
      %51 = vector.broadcast %50 : vector<16x1xi32> to vector<16x16xi32>
      %52 = arith.select %49, %51, %46 : vector<16x16xi1>, vector<16x16xi32>
      %53 = vector.extract_strided_slice %15 {offsets = [0, 9], sizes = [16, 1], strides = [1, 1]} : vector<16x16xi32> to vector<16x1xi32>
      %c6_i32 = arith.constant 6 : i32
      %54 = vector.broadcast %c6_i32 : i32 to vector<16x16xi32>
      %55 = arith.cmpi eq, %16, %54 : vector<16x16xi32>
      %56 = vector.shape_cast %53 : vector<16x1xi32> to vector<16x1xi32>
      %57 = vector.broadcast %56 : vector<16x1xi32> to vector<16x16xi32>
      %58 = arith.select %55, %57, %52 : vector<16x16xi1>, vector<16x16xi32>
      %59 = vector.extract_strided_slice %15 {offsets = [0, 8], sizes = [16, 1], strides = [1, 1]} : vector<16x16xi32> to vector<16x1xi32>
      %c7_i32 = arith.constant 7 : i32
      %60 = vector.broadcast %c7_i32 : i32 to vector<16x16xi32>
      %61 = arith.cmpi eq, %16, %60 : vector<16x16xi32>
      %62 = vector.shape_cast %59 : vector<16x1xi32> to vector<16x1xi32>
      %63 = vector.broadcast %62 : vector<16x1xi32> to vector<16x16xi32>
      %64 = arith.select %61, %63, %58 : vector<16x16xi1>, vector<16x16xi32>
      %65 = vector.extract_strided_slice %15 {offsets = [0, 7], sizes = [16, 1], strides = [1, 1]} : vector<16x16xi32> to vector<16x1xi32>
      %c8_i32 = arith.constant 8 : i32
      %66 = vector.broadcast %c8_i32 : i32 to vector<16x16xi32>
      %67 = arith.cmpi eq, %16, %66 : vector<16x16xi32>
      %68 = vector.shape_cast %65 : vector<16x1xi32> to vector<16x1xi32>
      %69 = vector.broadcast %68 : vector<16x1xi32> to vector<16x16xi32>
      %70 = arith.select %67, %69, %64 : vector<16x16xi1>, vector<16x16xi32>
      %71 = vector.extract_strided_slice %15 {offsets = [0, 6], sizes = [16, 1], strides = [1, 1]} : vector<16x16xi32> to vector<16x1xi32>
      %c9_i32 = arith.constant 9 : i32
      %72 = vector.broadcast %c9_i32 : i32 to vector<16x16xi32>
      %73 = arith.cmpi eq, %16, %72 : vector<16x16xi32>
      %74 = vector.shape_cast %71 : vector<16x1xi32> to vector<16x1xi32>
      %75 = vector.broadcast %74 : vector<16x1xi32> to vector<16x16xi32>
      %76 = arith.select %73, %75, %70 : vector<16x16xi1>, vector<16x16xi32>
      %77 = vector.extract_strided_slice %15 {offsets = [0, 5], sizes = [16, 1], strides = [1, 1]} : vector<16x16xi32> to vector<16x1xi32>
      %c10_i32 = arith.constant 10 : i32
      %78 = vector.broadcast %c10_i32 : i32 to vector<16x16xi32>
      %79 = arith.cmpi eq, %16, %78 : vector<16x16xi32>
      %80 = vector.shape_cast %77 : vector<16x1xi32> to vector<16x1xi32>
      %81 = vector.broadcast %80 : vector<16x1xi32> to vector<16x16xi32>
      %82 = arith.select %79, %81, %76 : vector<16x16xi1>, vector<16x16xi32>
      %83 = vector.extract_strided_slice %15 {offsets = [0, 4], sizes = [16, 1], strides = [1, 1]} : vector<16x16xi32> to vector<16x1xi32>
      %c11_i32 = arith.constant 11 : i32
      %84 = vector.broadcast %c11_i32 : i32 to vector<16x16xi32>
      %85 = arith.cmpi eq, %16, %84 : vector<16x16xi32>
      %86 = vector.shape_cast %83 : vector<16x1xi32> to vector<16x1xi32>
      %87 = vector.broadcast %86 : vector<16x1xi32> to vector<16x16xi32>
      %88 = arith.select %85, %87, %82 : vector<16x16xi1>, vector<16x16xi32>
      %89 = vector.extract_strided_slice %15 {offsets = [0, 3], sizes = [16, 1], strides = [1, 1]} : vector<16x16xi32> to vector<16x1xi32>
      %c12_i32 = arith.constant 12 : i32
      %90 = vector.broadcast %c12_i32 : i32 to vector<16x16xi32>
      %91 = arith.cmpi eq, %16, %90 : vector<16x16xi32>
      %92 = vector.shape_cast %89 : vector<16x1xi32> to vector<16x1xi32>
      %93 = vector.broadcast %92 : vector<16x1xi32> to vector<16x16xi32>
      %94 = arith.select %91, %93, %88 : vector<16x16xi1>, vector<16x16xi32>
      %95 = vector.extract_strided_slice %15 {offsets = [0, 2], sizes = [16, 1], strides = [1, 1]} : vector<16x16xi32> to vector<16x1xi32>
      %c13_i32 = arith.constant 13 : i32
      %96 = vector.broadcast %c13_i32 : i32 to vector<16x16xi32>
      %97 = arith.cmpi eq, %16, %96 : vector<16x16xi32>
      %98 = vector.shape_cast %95 : vector<16x1xi32> to vector<16x1xi32>
      %99 = vector.broadcast %98 : vector<16x1xi32> to vector<16x16xi32>
      %100 = arith.select %97, %99, %94 : vector<16x16xi1>, vector<16x16xi32>
      %101 = vector.extract_strided_slice %15 {offsets = [0, 1], sizes = [16, 1], strides = [1, 1]} : vector<16x16xi32> to vector<16x1xi32>
      %c14_i32 = arith.constant 14 : i32
      %102 = vector.broadcast %c14_i32 : i32 to vector<16x16xi32>
      %103 = arith.cmpi eq, %16, %102 : vector<16x16xi32>
      %104 = vector.shape_cast %101 : vector<16x1xi32> to vector<16x1xi32>
      %105 = vector.broadcast %104 : vector<16x1xi32> to vector<16x16xi32>
      %106 = arith.select %103, %105, %100 : vector<16x16xi1>, vector<16x16xi32>
      %107 = vector.extract_strided_slice %15 {offsets = [0, 0], sizes = [16, 1], strides = [1, 1]} : vector<16x16xi32> to vector<16x1xi32>
      %c15_i32 = arith.constant 15 : i32
      %108 = vector.broadcast %c15_i32 : i32 to vector<16x16xi32>
      %109 = arith.cmpi eq, %16, %108 : vector<16x16xi32>
      %110 = vector.shape_cast %107 : vector<16x1xi32> to vector<16x1xi32>
      %111 = vector.broadcast %110 : vector<16x1xi32> to vector<16x16xi32>
      %112 = arith.select %109, %111, %106 : vector<16x16xi1>, vector<16x16xi32>
      %c0_11 = arith.constant 0 : index
      %c0_12 = arith.constant 0 : index
      %c0_13 = arith.constant 0 : index
      %113 = vector.load %arg3[%c0_11, %c0_12, %c0_13] : memref<1x16x16xi32, #tpu.memory_space<vmem>>, vector<1x16x16xi32>
      %114 = vector.shape_cast %113 : vector<1x16x16xi32> to vector<16x16xi32>
      %115 = vector.shape_cast %112 : vector<16x16xi32> to vector<1x16x16xi32>
      tpu.vector_store %arg3[%c0_11, %c0_12, %c0_13], %115 {strides = array<i32>} : memref<1x16x16xi32, #tpu.memory_space<vmem>>, vector<1x16x16xi32>,
    } else {
    }
    return
  }
  func.func @transform_0(%arg0: i32, %arg1: memref<1xi32, #tpu.memory_space<smem>>) -> (i32, i32, i32) {
    %c0_i32 = arith.constant 0 : i32
    %c0_i32_0 = arith.constant 0 : i32
    %c0_i32_1 = arith.constant 0 : i32
    return %arg0, %c0_i32, %c0_i32_0 : i32, i32, i32
  }
  func.func @transform_1(%arg0: i32, %arg1: memref<1xi32, #tpu.memory_space<smem>>) -> (i32, i32, i32) {
    %c0_i32 = arith.constant 0 : i32
    %c0_i32_0 = arith.constant 0 : i32
    %c0_i32_1 = arith.constant 0 : i32
    return %arg0, %c0_i32, %c0_i32_0 : i32, i32, i32
  }
}

</mosaic_0001>

<llo_original>
// kernel: tpu_custom_call.1
$region0: #{tpu_custom_call.1}
  #allocation0 [shape = 'u32[]', space=smem, size = 0x4, offset = 0x4, fixed_abs, tag = 'smem constant byte address 0x4 - core index']
  #allocation1 [shape = 'u32[72,128]{1,0:T(1,128)}', space=vmem, size = 0x9000, scoped, tag = 'internal scratch']
  #allocation2 [shape = 's32[1]{0}', space=sflag, size = 0x4, scoped, tag = 'scoped memory for tpu_custom_call.1']
  #allocation3 [shape = 's32[1]{0:T(128)S(6)}', space=smem, size = 0x200, scoped, tag = 'prefetched SMEM operand 0']
  %s0 = inlined_call_operand.<no memory space> [shape: s32[1], index: 0, kind: input, shape index: {}]
  %s1 = inlined_call_operand.hbm [shape: s32[5,16,16], index: 1, kind: input, shape index: {}]
  %s2 = inlined_call_operand.hbm [shape: s32[5,16,16], index: 2, kind: output, shape index: {}]
  %s3 = sld [smem:[#allocation0]]
  $region57: #{tpu_custom_call.1} parent=0
    _
  %s5 = ssub.s32 1, %s3
  %s6 = scalar_select 0, %s5, %s3
  %7 = sst [smem:[#allocation3]] %s0
  $region1: #{tpu_custom_call.1} parent=0
    #allocation4 [shape = 'u8[16384]{0}', space=vmem, size = 0x4000, scoped, tag = 'input window, operand 1']
    #allocation5 [shape = 's32[2]{0}', space=sflag, size = 0x8, scoped, tag = 'scoped memory for tpu_custom_call.1']
    #allocation6 [shape = 's32[2]{0}', space=sflag, size = 0x8, scoped, tag = 'scoped memory for tpu_custom_call.1']
    #allocation7 [shape = 'u8[16384]{0}', space=vmem, size = 0x4000, scoped, tag = 'output window, operand 0']
    %8 = vsyncpa [#allocation5], 0
    %s9 = scalar_lea.sflag [#allocation5], 1
    %10 = vsyncpa %s9, 0
    %11 = vsyncpa [#allocation6], 0
    %s12 = scalar_lea.sflag [#allocation6], 1
    %13 = vsyncpa %s12, 0
    loop: start=0, step=1, limit=7
    $region2: #{tpu_custom_call.1} parent=1 // loop_pre_header
      _
    $region3: #{tpu_custom_call.1} parent=1 // loop_header
      %s15 = sphi 0, %s19
      %p16 = scmp.ge.s32.totalorder %s15, 7
      %s25 = sphi 0, %s27
      %s28 = sphi 0, %s25
      %s29 = sphi 0, %s28
      %s45 = sphi 0, %s29
      %s51 = sphi 0, %s53
      %s54 = sphi 0, %s51
      %s55 = sphi 0, %s54
      %s71 = sphi 0, %s55
    $region4: #{tpu_custom_call.1} parent=1 // loop_header_branch
      %18 = sbr.rel (%p16) target = $region8
    $region5: #{tpu_custom_call.1} parent=1 // loop_body
      %s20 = ssub.s32 %s15, 1
      %s21 = ssub.s32 %s15, 2
      %s22 = sadd.s32 %s15, 1
      %s23 = ssub.s32 %s15, %s22
      %p24 = scmp.eq.s32.totalorder %s23, 0
      %s26 = sadd.s32 %s25, 1
      %s27 = scalar_select %p24, %s25, %s26
      %p30 = pneg %p24
      %p31 = scmp.eq.s32.totalorder %s15, 4
      %p32 = por %p30, %p31
      %p33 = scmp.ne.s32.totalorder %s25, %s28
      %p34 = scmp.eq.s32.totalorder %s15, 0
      %p35 = por %p33, %p34
      %p36 = scmp.ne.s32.totalorder %s25, %s28
      %p37 = scmp.eq.s32.totalorder %s20, 4
      %p38 = por %p36, %p37
      %p39 = scmp.ne.s32.totalorder %s28, %s29
      %p40 = scmp.eq.s32.totalorder %s20, 0
      %p41 = por %p39, %p40
      %p42 = scmp.ne.s32.totalorder %s28, %s29
      %p43 = scmp.eq.s32.totalorder %s21, 4
      %p44 = por %p42, %p43
      %p46 = scmp.ne.s32.totalorder %s29, %s45
      %p47 = scmp.eq.s32.totalorder %s21, 0
      %p48 = por %p46, %p47
      %s49 = ssub.s32 %s15, %s22
      %p50 = scmp.eq.s32.totalorder %s49, 0
      %s52 = sadd.s32 %s51, 1
      %s53 = scalar_select %p50, %s51, %s52
      %p56 = pneg %p50
      %p57 = scmp.eq.s32.totalorder %s15, 4
      %p58 = por %p56, %p57
      %p59 = scmp.ne.s32.totalorder %s51, %s54
      %p60 = scmp.eq.s32.totalorder %s15, 0
      %p61 = por %p59, %p60
      %p62 = scmp.ne.s32.totalorder %s51, %s54
      %p63 = scmp.eq.s32.totalorder %s20, 4
      %p64 = por %p62, %p63
      %p65 = scmp.ne.s32.totalorder %s54, %s55
      %p66 = scmp.eq.s32.totalorder %s20, 0
      %p67 = por %p65, %p66
      %p68 = scmp.ne.s32.totalorder %s54, %s55
      %p69 = scmp.eq.s32.totalorder %s21, 4
      %p70 = por %p68, %p69
      %p72 = scmp.ne.s32.totalorder %s55, %s71
      %p73 = scmp.eq.s32.totalorder %s21, 0
      %p74 = por %p72, %p73
      %p75 = scmp.le.s32.totalorder 1, %s15
      %p76 = scmp.lt.s32.totalorder %s15, 6
      %p77 = pnand %p75, %p76
      %p78 = pneg %p77
      // Predicated region
      $region9: #{tpu_custom_call.1} parent=5 // pred_check
        _
      $region10: #{tpu_custom_call.1} parent=5 // pred_check_branch
        %80 = sbr.rel (%p77) target = $region12
      $region11: #{tpu_custom_call.1} parent=5 // pred_region
        %s81 = ssub.s32 %s15, 1
      $region12: #{tpu_custom_call.1} parent=5 // pred_fallthru
        _
      %p82 = scmp.lt.s32.totalorder %s15, 5
      // Predicated region
      $region13: #{tpu_custom_call.1} parent=5 // pred_check
        %p83 = pneg %p82
      $region14: #{tpu_custom_call.1} parent=5 // pred_check_branch
        %85 = sbr.rel (%p83) target = $region16
      $region15: #{tpu_custom_call.1} parent=5 // pred_region
        // Predicated region
        $region17: #{tpu_custom_call.1} parent=15 // pred_check
          %p86 = pneg %p35
        $region18: #{tpu_custom_call.1} parent=15 // pred_check_branch
          %88 = sbr.rel (%p86) target = $region20
        $region19: #{tpu_custom_call.1} parent=15 // pred_region
          %s89 = sand.u32 %s25, 1
          %s90 = scalar_lea.sflag [#allocation5], %s89
          %s91 = sand.u32 %s25, 1
          %s92 = smul.addr %s91, 16
          %s93 = scalar_lea.vmem [#allocation4], %s92
          %95 = vsyncadd %s90, 0
          %s96 = smul.addr %s15, 2
          %s97 = smul.addr %s96, 8
          %s98 = scalar_lea.hbm %s1, %s97
          %s99 = sshll.u32 %s98, 4
          %s100 = int_to_ptr.hbm [resolvable:$true] %s99
          %s101 = sshll.u32 %s93, 4
          %s102 = int_to_ptr.vmem [resolvable:$true] %s101
          %107 = dma.hbm_to_vmem [thread:$0]  %s100, 256, %s102, %s90, 128, 128, 8
        $region20: #{tpu_custom_call.1} parent=15 // pred_fallthru
          _
      $region16: #{tpu_custom_call.1} parent=5 // pred_fallthru
        _
      %p108 = scmp.le.s32.totalorder 1, %s15
      %p109 = scmp.lt.s32.totalorder %s15, 6
      %p110 = pnand %p108, %p109
      %p111 = pneg %p110
      // Predicated region
      $region21: #{tpu_custom_call.1} parent=5 // pred_check
        _
      $region22: #{tpu_custom_call.1} parent=5 // pred_check_branch
        %113 = sbr.rel (%p110) target = $region24
      $region23: #{tpu_custom_call.1} parent=5 // pred_region
        %s114 = ssub.s32 %s15, 1
        %s115 = sand.u32 %s28, 1
        %s116 = scalar_lea.sflag [#allocation5], %s115
        %s117 = sand.u32 %s28, 1
        %s118 = smul.addr %s117, 16
        %s119 = scalar_lea.vmem [#allocation4], %s118
        // Predicated region
        $region25: #{tpu_custom_call.1} parent=23 // pred_check
          %p120 = pneg %p41
        $region26: #{tpu_custom_call.1} parent=23 // pred_check_branch
          %122 = sbr.rel (%p120) target = $region28
        $region27: #{tpu_custom_call.1} parent=23 // pred_region
          %124 = dma.done %s116, 256
        $region28: #{tpu_custom_call.1} parent=23 // pred_fallthru
          _
        %s125 = sand.u32 %s28, 1
        %s126 = scalar_lea.sflag [#allocation5], %s125
        %s127 = sand.u32 %s28, 1
        %s128 = smul.addr %s127, 16
        %s129 = scalar_lea.vmem [#allocation4], %s128
        %p130 = pneg %p41
        %p131 = pneg %p38
        %p132 = pneg %p67
        %p133 = pneg %p64
        %s134 = sand.u32 %s54, 1
        %s135 = scalar_lea.sflag [#allocation6], %s134
        %s136 = sand.u32 %s54, 1
        %s137 = smul.addr %s136, 16
        %s138 = scalar_lea.vmem [#allocation7], %s137
        %s139 = sld [smem:[#allocation3]]
        %v140 = vld [vmem:[%s119] sm:$0xff]
        %v141 = vld [vmem:[%s119 + $0x8] sm:$0xff]
        %p142 = scmp.eq.s32.totalorder %s139, 0
        // Predicated region
        $region29: #{tpu_custom_call.1} parent=23 // pred_check
          %p143 = pneg %p142
        $region30: #{tpu_custom_call.1} parent=23 // pred_check_branch
          %145 = sbr.rel (%p143) target = $region32
        $region31: #{tpu_custom_call.1} parent=23 // pred_region
          %vm146 = vcmask 130048
          %147 = vst.msk [vmem:[%s138] sm:$0xff] %vm146, %v140
          %148 = vst.msk [vmem:[%s138 + $0x8] sm:$0xff] %vm146, %v141
        $region32: #{tpu_custom_call.1} parent=23 // pred_fallthru
          _
        %p149 = scmp.eq.s32.totalorder %s139, 1
        // Predicated region
        $region33: #{tpu_custom_call.1} parent=23 // pred_check
          %p150 = pneg %p149
        $region34: #{tpu_custom_call.1} parent=23 // pred_check_branch
          %152 = sbr.rel (%p150) target = $region36
        $region35: #{tpu_custom_call.1} parent=23 // pred_region
          %153 = vxpose.xlu0.b32.start [1/16] %v140, 128
          %154 = vxpose.xlu0.b32.cont [2/16] %v141, 128
          %155 = vxpose.xlu0.b32.cont [3/16] 0, 128
          %156 = vxpose.xlu0.b32.cont [4/16] 0, 128
          %157 = vxpose.xlu0.b32.cont [5/16] 0, 128
          %158 = vxpose.xlu0.b32.cont [6/16] 0, 128
          %159 = vxpose.xlu0.b32.cont [7/16] 0, 128
          %160 = vxpose.xlu0.b32.cont [8/16] 0, 128
          %161 = vxpose.xlu0.b32.cont [9/16] 0, 128
          %162 = vxpose.xlu0.b32.cont [10/16] 0, 128
          %163 = vxpose.xlu0.b32.cont [11/16] 0, 128
          %164 = vxpose.xlu0.b32.cont [12/16] 0, 128
          %165 = vxpose.xlu0.b32.cont [13/16] 0, 128
          %166 = vxpose.xlu0.b32.cont [14/16] 0, 128
          %167 = vxpose.xlu0.b32.cont [15/16] 0, 128
          %168 = vxpose.xlu0.b32.end [16/16] 0, 128
          %v169 = vpop.trf.xlu0
          %v170 = vpop.trf.xlu0
          %v171 = vpop.trf.xlu0
          %v172 = vpop.trf.xlu0
          %v173 = vpop.trf.xlu0
          %v174 = vpop.trf.xlu0
          %v175 = vpop.trf.xlu0
          %v176 = vpop.trf.xlu0
          %v177 = vpop.trf.xlu0
          %v178 = vpop.trf.xlu0
          %v179 = vpop.trf.xlu0
          %v180 = vpop.trf.xlu0
          %v181 = vpop.trf.xlu0
          %v182 = vpop.trf.xlu0
          %v183 = vpop.trf.xlu0
          %v184 = vpop.trf.xlu0
          %v185 = vlaneseq
          %v186 = vshrl.u32 %v185, 7
          %v187 = vadd.s32 %v186, 8
          %vm188 = vcmp.eq.s32.totalorder %v186, 0
          %vm189 = vcmp.eq.s32.totalorder %v187, 0
          %v190 = vperm.slane %v170, 7
          %v191 = vsel %vm188, %v190, %v169
          %v192 = vsel %vm189, %v190, %v170
          %vm193 = vcmp.eq.s32.totalorder %v186, 1
          %vm194 = vcmp.eq.s32.totalorder %v187, 1
          %v195 = vperm.slane %v170, 6
          %v196 = vsel %vm193, %v195, %v191
          %v197 = vsel %vm194, %v195, %v192
          %vm198 = vcmp.eq.s32.totalorder %v186, 2
          %vm199 = vcmp.eq.s32.totalorder %v187, 2
          %v200 = vperm.slane %v170, 5
          %v201 = vsel %vm198, %v200, %v196
          %v202 = vsel %vm199, %v200, %v197
          %vm203 = vcmp.eq.s32.totalorder %v186, 3
          %vm204 = vcmp.eq.s32.totalorder %v187, 3
          %v205 = vperm.slane %v170, 4
          %v206 = vsel %vm203, %v205, %v201
          %v207 = vsel %vm204, %v205, %v202
          %vm208 = vcmp.eq.s32.totalorder %v186, 4
          %vm209 = vcmp.eq.s32.totalorder %v187, 4
          %v210 = vperm.slane %v170, 3
          %v211 = vsel %vm208, %v210, %v206
          %v212 = vsel %vm209, %v210, %v207
          %vm213 = vcmp.eq.s32.totalorder %v186, 5
          %vm214 = vcmp.eq.s32.totalorder %v187, 5
          %v215 = vperm.slane %v170, 2
          %v216 = vsel %vm213, %v215, %v211
          %v217 = vsel %vm214, %v215, %v212
          %vm218 = vcmp.eq.s32.totalorder %v186, 6
          %vm219 = vcmp.eq.s32.totalorder %v187, 6
          %v220 = vperm.slane %v170, 1
          %v221 = vsel %vm218, %v220, %v216
          %v222 = vsel %vm219, %v220, %v217
          %vm223 = vcmp.eq.s32.totalorder %v186, 7
          %vm224 = vcmp.eq.s32.totalorder %v187, 7
          %v225 = vperm.slane %v170, 0
          %v226 = vsel %vm223, %v225, %v221
          %v227 = vsel %vm224, %v225, %v222
          %vm228 = vcmp.eq.s32.totalorder %v186, 8
          %vm229 = vcmp.eq.s32.totalorder %v187, 8
          %v230 = vperm.slane %v169, 7
          %v231 = vsel %vm228, %v230, %v226
          %v232 = vsel %vm229, %v230, %v227
          %vm233 = vcmp.eq.s32.totalorder %v186, 9
          %vm234 = vcmp.eq.s32.totalorder %v187, 9
          %v235 = vperm.slane %v169, 6
          %v236 = vsel %vm233, %v235, %v231
          %v237 = vsel %vm234, %v235, %v232
          %vm238 = vcmp.eq.s32.totalorder %v186, 10
          %vm239 = vcmp.eq.s32.totalorder %v187, 10
          %v240 = vperm.slane %v169, 5
          %v241 = vsel %vm238, %v240, %v236
          %v242 = vsel %vm239, %v240, %v237
          %vm243 = vcmp.eq.s32.totalorder %v186, 11
          %vm244 = vcmp.eq.s32.totalorder %v187, 11
          %v245 = vperm.slane %v169, 4
          %v246 = vsel %vm243, %v245, %v241
          %v247 = vsel %vm244, %v245, %v242
          %vm248 = vcmp.eq.s32.totalorder %v186, 12
          %vm249 = vcmp.eq.s32.totalorder %v187, 12
          %v250 = vperm.slane %v169, 3
          %v251 = vsel %vm248, %v250, %v246
          %v252 = vsel %vm249, %v250, %v247
          %vm253 = vcmp.eq.s32.totalorder %v186, 13
          %vm254 = vcmp.eq.s32.totalorder %v187, 13
          %v255 = vperm.slane %v169, 2
          %v256 = vsel %vm253, %v255, %v251
          %v257 = vsel %vm254, %v255, %v252
          %vm258 = vcmp.eq.s32.totalorder %v186, 14
          %vm259 = vcmp.eq.s32.totalorder %v187, 14
          %v260 = vperm.slane %v169, 1
          %v261 = vsel %vm258, %v260, %v256
          %v262 = vsel %vm259, %v260, %v257
          %vm263 = vcmp.eq.s32.totalorder %v186, 15
          %vm264 = vcmp.eq.s32.totalorder %v187, 15
          %v265 = vperm.slane %v169, 0
          %v266 = vsel %vm263, %v265, %v261
          %v267 = vsel %vm264, %v265, %v262
          %vm268 = vcmask 130048
          %269 = vst.msk [vmem:[%s138] sm:$0xff] %vm268, %v266
          %270 = vst.msk [vmem:[%s138 + $0x8] sm:$0xff] %vm268, %v267
        $region36: #{tpu_custom_call.1} parent=23 // pred_fallthru
          _
        %p271 = scmp.eq.s32.totalorder %s139, 2
        // Predicated region
        $region37: #{tpu_custom_call.1} parent=23 // pred_check
          %p272 = pneg %p271
        $region38: #{tpu_custom_call.1} parent=23 // pred_check_branch
          %274 = sbr.rel (%p272) target = $region40
        $region39: #{tpu_custom_call.1} parent=23 // pred_region
          %v275 = vlaneseq
          %v276 = vand.u32 %v275, 127
          %vm277 = vcmp.eq.s32.totalorder %v276, 0
          %278 = vset.pattern.permute.xlu0 15
          %279 = vperm.xlu0 %278, %v140
          %v280 = vpop.permute.xlu0 %279
          %281 = vset.pattern.permute.xlu0 15
          %282 = vperm.xlu0 %281, %v141
          %v283 = vpop.permute.xlu0 %282
          %v284 = vsel %vm277, %v280, %v140
          %v285 = vsel %vm277, %v283, %v141
          %vm286 = vcmp.eq.s32.totalorder %v276, 1
          %287 = vset.pattern.permute.xlu0 14
          %288 = vperm.xlu0 %287, %v140
          %v289 = vpop.permute.xlu0 %288
          %290 = vset.pattern.permute.xlu0 14
          %291 = vperm.xlu0 %290, %v141
          %v292 = vpop.permute.xlu0 %291
          %v293 = vsel %vm286, %v289, %v284
          %v294 = vsel %vm286, %v292, %v285
          %vm295 = vcmp.eq.s32.totalorder %v276, 2
          %296 = vset.pattern.permute.xlu0 13
          %297 = vperm.xlu0 %296, %v140
          %v298 = vpop.permute.xlu0 %297
          %299 = vset.pattern.permute.xlu0 13
          %300 = vperm.xlu0 %299, %v141
          %v301 = vpop.permute.xlu0 %300
          %v302 = vsel %vm295, %v298, %v293
          %v303 = vsel %vm295, %v301, %v294
          %vm304 = vcmp.eq.s32.totalorder %v276, 3
          %305 = vset.pattern.permute.xlu0 12
          %306 = vperm.xlu0 %305, %v140
          %v307 = vpop.permute.xlu0 %306
          %308 = vset.pattern.permute.xlu0 12
          %309 = vperm.xlu0 %308, %v141
          %v310 = vpop.permute.xlu0 %309
          %v311 = vsel %vm304, %v307, %v302
          %v312 = vsel %vm304, %v310, %v303
          %vm313 = vcmp.eq.s32.totalorder %v276, 4
          %314 = vset.pattern.permute.xlu0 11
          %315 = vperm.xlu0 %314, %v140
          %v316 = vpop.permute.xlu0 %315
          %317 = vset.pattern.permute.xlu0 11
          %318 = vperm.xlu0 %317, %v141
          %v319 = vpop.permute.xlu0 %318
          %v320 = vsel %vm313, %v316, %v311
          %v321 = vsel %vm313, %v319, %v312
          %vm322 = vcmp.eq.s32.totalorder %v276, 5
          %323 = vset.pattern.permute.xlu0 10
          %324 = vperm.xlu0 %323, %v140
          %v325 = vpop.permute.xlu0 %324
          %326 = vset.pattern.permute.xlu0 10
          %327 = vperm.xlu0 %326, %v141
          %v328 = vpop.permute.xlu0 %327
          %v329 = vsel %vm322, %v325, %v320
          %v330 = vsel %vm322, %v328, %v321
          %vm331 = vcmp.eq.s32.totalorder %v276, 6
          %332 = vset.pattern.permute.xlu0 9
          %333 = vperm.xlu0 %332, %v140
          %v334 = vpop.permute.xlu0 %333
          %335 = vset.pattern.permute.xlu0 9
          %336 = vperm.xlu0 %335, %v141
          %v337 = vpop.permute.xlu0 %336
          %v338 = vsel %vm331, %v334, %v329
          %v339 = vsel %vm331, %v337, %v330
          %vm340 = vcmp.eq.s32.totalorder %v276, 7
          %341 = vset.pattern.permute.xlu0 8
          %342 = vperm.xlu0 %341, %v140
          %v343 = vpop.permute.xlu0 %342
          %344 = vset.pattern.permute.xlu0 8
          %345 = vperm.xlu0 %344, %v141
          %v346 = vpop.permute.xlu0 %345
          %v347 = vsel %vm340, %v343, %v338
          %v348 = vsel %vm340, %v346, %v339
          %vm349 = vcmp.eq.s32.totalorder %v276, 8
          %350 = vset.pattern.permute.xlu0 7
          %351 = vperm.xlu0 %350, %v140
          %v352 = vpop.permute.xlu0 %351
          %353 = vset.pattern.permute.xlu0 7
          %354 = vperm.xlu0 %353, %v141
          %v355 = vpop.permute.xlu0 %354
          %v356 = vsel %vm349, %v352, %v347
          %v357 = vsel %vm349, %v355, %v348
          %vm358 = vcmp.eq.s32.totalorder %v276, 9
          %359 = vset.pattern.permute.xlu0 6
          %360 = vperm.xlu0 %359, %v140
          %v361 = vpop.permute.xlu0 %360
          %362 = vset.pattern.permute.xlu0 6
          %363 = vperm.xlu0 %362, %v141
          %v364 = vpop.permute.xlu0 %363
          %v365 = vsel %vm358, %v361, %v356
          %v366 = vsel %vm358, %v364, %v357
          %vm367 = vcmp.eq.s32.totalorder %v276, 10
          %368 = vset.pattern.permute.xlu0 5
          %369 = vperm.xlu0 %368, %v140
          %v370 = vpop.permute.xlu0 %369
          %371 = vset.pattern.permute.xlu0 5
          %372 = vperm.xlu0 %371, %v141
          %v373 = vpop.permute.xlu0 %372
          %v374 = vsel %vm367, %v370, %v365
          %v375 = vsel %vm367, %v373, %v366
          %vm376 = vcmp.eq.s32.totalorder %v276, 11
          %377 = vset.pattern.permute.xlu0 4
          %378 = vperm.xlu0 %377, %v140
          %v379 = vpop.permute.xlu0 %378
          %380 = vset.pattern.permute.xlu0 4
          %381 = vperm.xlu0 %380, %v141
          %v382 = vpop.permute.xlu0 %381
          %v383 = vsel %vm376, %v379, %v374
          %v384 = vsel %vm376, %v382, %v375
          %vm385 = vcmp.eq.s32.totalorder %v276, 12
          %386 = vset.pattern.permute.xlu0 3
          %387 = vperm.xlu0 %386, %v140
          %v388 = vpop.permute.xlu0 %387
          %389 = vset.pattern.permute.xlu0 3
          %390 = vperm.xlu0 %389, %v141
          %v391 = vpop.permute.xlu0 %390
          %v392 = vsel %vm385, %v388, %v383
          %v393 = vsel %vm385, %v391, %v384
          %vm394 = vcmp.eq.s32.totalorder %v276, 13
          %395 = vset.pattern.permute.xlu0 2
          %396 = vperm.xlu0 %395, %v140
          %v397 = vpop.permute.xlu0 %396
          %398 = vset.pattern.permute.xlu0 2
          %399 = vperm.xlu0 %398, %v141
          %v400 = vpop.permute.xlu0 %399
          %v401 = vsel %vm394, %v397, %v392
          %v402 = vsel %vm394, %v400, %v393
          %vm403 = vcmp.eq.s32.totalorder %v276, 14
          %404 = vset.pattern.permute.xlu0 1
          %405 = vperm.xlu0 %404, %v140
          %v406 = vpop.permute.xlu0 %405
          %407 = vset.pattern.permute.xlu0 1
          %408 = vperm.xlu0 %407, %v141
          %v409 = vpop.permute.xlu0 %408
          %v410 = vsel %vm403, %v406, %v401
          %v411 = vsel %vm403, %v409, %v402
          %vm412 = vcmp.eq.s32.totalorder %v276, 15
          %413 = vset.pattern.permute.xlu0 0
          %414 = vperm.xlu0 %413, %v140
          %v415 = vpop.permute.xlu0 %414
          %416 = vset.pattern.permute.xlu0 0
          %417 = vperm.xlu0 %416, %v141
          %v418 = vpop.permute.xlu0 %417
          %v419 = vsel %vm412, %v415, %v410
          %v420 = vsel %vm412, %v418, %v411
          %v421 = vlaneseq
          %v422 = vshrl.u32 %v421, 7
          %v423 = vadd.s32 %v422, 8
          %vm424 = vcmp.eq.s32.totalorder %v422, 0
          %vm425 = vcmp.eq.s32.totalorder %v423, 0
          %v426 = vperm.slane %v420, 7
          %v427 = vsel %vm424, %v426, %v419
          %v428 = vsel %vm425, %v426, %v420
          %vm429 = vcmp.eq.s32.totalorder %v422, 1
          %vm430 = vcmp.eq.s32.totalorder %v423, 1
          %v431 = vperm.slane %v420, 6
          %v432 = vsel %vm429, %v431, %v427
          %v433 = vsel %vm430, %v431, %v428
          %vm434 = vcmp.eq.s32.totalorder %v422, 2
          %vm435 = vcmp.eq.s32.totalorder %v423, 2
          %v436 = vperm.slane %v420, 5
          %v437 = vsel %vm434, %v436, %v432
          %v438 = vsel %vm435, %v436, %v433
          %vm439 = vcmp.eq.s32.totalorder %v422, 3
          %vm440 = vcmp.eq.s32.totalorder %v423, 3
          %v441 = vperm.slane %v420, 4
          %v442 = vsel %vm439, %v441, %v437
          %v443 = vsel %vm440, %v441, %v438
          %vm444 = vcmp.eq.s32.totalorder %v422, 4
          %vm445 = vcmp.eq.s32.totalorder %v423, 4
          %v446 = vperm.slane %v420, 3
          %v447 = vsel %vm444, %v446, %v442
          %v448 = vsel %vm445, %v446, %v443
          %vm449 = vcmp.eq.s32.totalorder %v422, 5
          %vm450 = vcmp.eq.s32.totalorder %v423, 5
          %v451 = vperm.slane %v420, 2
          %v452 = vsel %vm449, %v451, %v447
          %v453 = vsel %vm450, %v451, %v448
          %vm454 = vcmp.eq.s32.totalorder %v422, 6
          %vm455 = vcmp.eq.s32.totalorder %v423, 6
          %v456 = vperm.slane %v420, 1
          %v457 = vsel %vm454, %v456, %v452
          %v458 = vsel %vm455, %v456, %v453
          %vm459 = vcmp.eq.s32.totalorder %v422, 7
          %vm460 = vcmp.eq.s32.totalorder %v423, 7
          %v461 = vperm.slane %v420, 0
          %v462 = vsel %vm459, %v461, %v457
          %v463 = vsel %vm460, %v461, %v458
          %vm464 = vcmp.eq.s32.totalorder %v422, 8
          %vm465 = vcmp.eq.s32.totalorder %v423, 8
          %v466 = vperm.slane %v419, 7
          %v467 = vsel %vm464, %v466, %v462
          %v468 = vsel %vm465, %v466, %v463
          %vm469 = vcmp.eq.s32.totalorder %v422, 9
          %vm470 = vcmp.eq.s32.totalorder %v423, 9
          %v471 = vperm.slane %v419, 6
          %v472 = vsel %vm469, %v471, %v467
          %v473 = vsel %vm470, %v471, %v468
          %vm474 = vcmp.eq.s32.totalorder %v422, 10
          %vm475 = vcmp.eq.s32.totalorder %v423, 10
          %v476 = vperm.slane %v419, 5
          %v477 = vsel %vm474, %v476, %v472
          %v478 = vsel %vm475, %v476, %v473
          %vm479 = vcmp.eq.s32.totalorder %v422, 11
          %vm480 = vcmp.eq.s32.totalorder %v423, 11
          %v481 = vperm.slane %v419, 4
          %v482 = vsel %vm479, %v481, %v477
          %v483 = vsel %vm480, %v481, %v478
          %vm484 = vcmp.eq.s32.totalorder %v422, 12
          %vm485 = vcmp.eq.s32.totalorder %v423, 12
          %v486 = vperm.slane %v419, 3
          %v487 = vsel %vm484, %v486, %v482
          %v488 = vsel %vm485, %v486, %v483
          %vm489 = vcmp.eq.s32.totalorder %v422, 13
          %vm490 = vcmp.eq.s32.totalorder %v423, 13
          %v491 = vperm.slane %v419, 2
          %v492 = vsel %vm489, %v491, %v487
          %v493 = vsel %vm490, %v491, %v488
          %vm494 = vcmp.eq.s32.totalorder %v422, 14
          %vm495 = vcmp.eq.s32.totalorder %v423, 14
          %v496 = vperm.slane %v419, 1
          %v497 = vsel %vm494, %v496, %v492
          %v498 = vsel %vm495, %v496, %v493
          %vm499 = vcmp.eq.s32.totalorder %v422, 15
          %vm500 = vcmp.eq.s32.totalorder %v423, 15
          %v501 = vperm.slane %v419, 0
          %v502 = vsel %vm499, %v501, %v497
          %v503 = vsel %vm500, %v501, %v498
          %vm504 = vcmask 130048
          %505 = vst.msk [vmem:[%s138] sm:$0xff] %vm504, %v502
          %506 = vst.msk [vmem:[%s138 + $0x8] sm:$0xff] %vm504, %v503
        $region40: #{tpu_custom_call.1} parent=23 // pred_fallthru
          _
        %p507 = scmp.eq.s32.totalorder %s139, 3
        // Predicated region
        $region41: #{tpu_custom_call.1} parent=23 // pred_check
          %p508 = pneg %p507
        $region42: #{tpu_custom_call.1} parent=23 // pred_check_branch
          %510 = sbr.rel (%p508) target = $region44
        $region43: #{tpu_custom_call.1} parent=23 // pred_region
          %511 = vxpose.xlu0.b32.start [1/16] %v140, 128
          %512 = vxpose.xlu0.b32.cont [2/16] %v141, 128
          %513 = vxpose.xlu0.b32.cont [3/16] 0, 128
          %514 = vxpose.xlu0.b32.cont [4/16] 0, 128
          %515 = vxpose.xlu0.b32.cont [5/16] 0, 128
          %516 = vxpose.xlu0.b32.cont [6/16] 0, 128
          %517 = vxpose.xlu0.b32.cont [7/16] 0, 128
          %518 = vxpose.xlu0.b32.cont [8/16] 0, 128
          %519 = vxpose.xlu0.b32.cont [9/16] 0, 128
          %520 = vxpose.xlu0.b32.cont [10/16] 0, 128
          %521 = vxpose.xlu0.b32.cont [11/16] 0, 128
          %522 = vxpose.xlu0.b32.cont [12/16] 0, 128
          %523 = vxpose.xlu0.b32.cont [13/16] 0, 128
          %524 = vxpose.xlu0.b32.cont [14/16] 0, 128
          %525 = vxpose.xlu0.b32.cont [15/16] 0, 128
          %526 = vxpose.xlu0.b32.end [16/16] 0, 128
          %v527 = vpop.trf.xlu0
          %v528 = vpop.trf.xlu0
          %v529 = vpop.trf.xlu0
          %v530 = vpop.trf.xlu0
          %v531 = vpop.trf.xlu0
          %v532 = vpop.trf.xlu0
          %v533 = vpop.trf.xlu0
          %v534 = vpop.trf.xlu0
          %v535 = vpop.trf.xlu0
          %v536 = vpop.trf.xlu0
          %v537 = vpop.trf.xlu0
          %v538 = vpop.trf.xlu0
          %v539 = vpop.trf.xlu0
          %v540 = vpop.trf.xlu0
          %v541 = vpop.trf.xlu0
          %v542 = vpop.trf.xlu0
          %v543 = vlaneseq
          %v544 = vand.u32 %v543, 127
          %vm545 = vcmp.eq.s32.totalorder %v544, 0
          %546 = vset.pattern.permute.xlu0 15
          %547 = vperm.xlu0 %546, %v527
          %v548 = vpop.permute.xlu0 %547
          %549 = vset.pattern.permute.xlu0 15
          %550 = vperm.xlu0 %549, %v528
          %v551 = vpop.permute.xlu0 %550
          %v552 = vsel %vm545, %v548, %v527
          %v553 = vsel %vm545, %v551, %v528
          %vm554 = vcmp.eq.s32.totalorder %v544, 1
          %555 = vset.pattern.permute.xlu0 14
          %556 = vperm.xlu0 %555, %v527
          %v557 = vpop.permute.xlu0 %556
          %558 = vset.pattern.permute.xlu0 14
          %559 = vperm.xlu0 %558, %v528
          %v560 = vpop.permute.xlu0 %559
          %v561 = vsel %vm554, %v557, %v552
          %v562 = vsel %vm554, %v560, %v553
          %vm563 = vcmp.eq.s32.totalorder %v544, 2
          %564 = vset.pattern.permute.xlu0 13
          %565 = vperm.xlu0 %564, %v527
          %v566 = vpop.permute.xlu0 %565
          %567 = vset.pattern.permute.xlu0 13
          %568 = vperm.xlu0 %567, %v528
          %v569 = vpop.permute.xlu0 %568
          %v570 = vsel %vm563, %v566, %v561
          %v571 = vsel %vm563, %v569, %v562
          %vm572 = vcmp.eq.s32.totalorder %v544, 3
          %573 = vset.pattern.permute.xlu0 12
          %574 = vperm.xlu0 %573, %v527
          %v575 = vpop.permute.xlu0 %574
          %576 = vset.pattern.permute.xlu0 12
          %577 = vperm.xlu0 %576, %v528
          %v578 = vpop.permute.xlu0 %577
          %v579 = vsel %vm572, %v575, %v570
          %v580 = vsel %vm572, %v578, %v571
          %vm581 = vcmp.eq.s32.totalorder %v544, 4
          %582 = vset.pattern.permute.xlu0 11
          %583 = vperm.xlu0 %582, %v527
          %v584 = vpop.permute.xlu0 %583
          %585 = vset.pattern.permute.xlu0 11
          %586 = vperm.xlu0 %585, %v528
          %v587 = vpop.permute.xlu0 %586
          %v588 = vsel %vm581, %v584, %v579
          %v589 = vsel %vm581, %v587, %v580
          %vm590 = vcmp.eq.s32.totalorder %v544, 5
          %591 = vset.pattern.permute.xlu0 10
          %592 = vperm.xlu0 %591, %v527
          %v593 = vpop.permute.xlu0 %592
          %594 = vset.pattern.permute.xlu0 10
          %595 = vperm.xlu0 %594, %v528
          %v596 = vpop.permute.xlu0 %595
          %v597 = vsel %vm590, %v593, %v588
          %v598 = vsel %vm590, %v596, %v589
          %vm599 = vcmp.eq.s32.totalorder %v544, 6
          %600 = vset.pattern.permute.xlu0 9
          %601 = vperm.xlu0 %600, %v527
          %v602 = vpop.permute.xlu0 %601
          %603 = vset.pattern.permute.xlu0 9
          %604 = vperm.xlu0 %603, %v528
          %v605 = vpop.permute.xlu0 %604
          %v606 = vsel %vm599, %v602, %v597
          %v607 = vsel %vm599, %v605, %v598
          %vm608 = vcmp.eq.s32.totalorder %v544, 7
          %609 = vset.pattern.permute.xlu0 8
          %610 = vperm.xlu0 %609, %v527
          %v611 = vpop.permute.xlu0 %610
          %612 = vset.pattern.permute.xlu0 8
          %613 = vperm.xlu0 %612, %v528
          %v614 = vpop.permute.xlu0 %613
          %v615 = vsel %vm608, %v611, %v606
          %v616 = vsel %vm608, %v614, %v607
          %vm617 = vcmp.eq.s32.totalorder %v544, 8
          %618 = vset.pattern.permute.xlu0 7
          %619 = vperm.xlu0 %618, %v527
          %v620 = vpop.permute.xlu0 %619
          %621 = vset.pattern.permute.xlu0 7
          %622 = vperm.xlu0 %621, %v528
          %v623 = vpop.permute.xlu0 %622
          %v624 = vsel %vm617, %v620, %v615
          %v625 = vsel %vm617, %v623, %v616
          %vm626 = vcmp.eq.s32.totalorder %v544, 9
          %627 = vset.pattern.permute.xlu0 6
          %628 = vperm.xlu0 %627, %v527
          %v629 = vpop.permute.xlu0 %628
          %630 = vset.pattern.permute.xlu0 6
          %631 = vperm.xlu0 %630, %v528
          %v632 = vpop.permute.xlu0 %631
          %v633 = vsel %vm626, %v629, %v624
          %v634 = vsel %vm626, %v632, %v625
          %vm635 = vcmp.eq.s32.totalorder %v544, 10
          %636 = vset.pattern.permute.xlu0 5
          %637 = vperm.xlu0 %636, %v527
          %v638 = vpop.permute.xlu0 %637
          %639 = vset.pattern.permute.xlu0 5
          %640 = vperm.xlu0 %639, %v528
          %v641 = vpop.permute.xlu0 %640
          %v642 = vsel %vm635, %v638, %v633
          %v643 = vsel %vm635, %v641, %v634
          %vm644 = vcmp.eq.s32.totalorder %v544, 11
          %645 = vset.pattern.permute.xlu0 4
          %646 = vperm.xlu0 %645, %v527
          %v647 = vpop.permute.xlu0 %646
          %648 = vset.pattern.permute.xlu0 4
          %649 = vperm.xlu0 %648, %v528
          %v650 = vpop.permute.xlu0 %649
          %v651 = vsel %vm644, %v647, %v642
          %v652 = vsel %vm644, %v650, %v643
          %vm653 = vcmp.eq.s32.totalorder %v544, 12
          %654 = vset.pattern.permute.xlu0 3
          %655 = vperm.xlu0 %654, %v527
          %v656 = vpop.permute.xlu0 %655
          %657 = vset.pattern.permute.xlu0 3
          %658 = vperm.xlu0 %657, %v528
          %v659 = vpop.permute.xlu0 %658
          %v660 = vsel %vm653, %v656, %v651
          %v661 = vsel %vm653, %v659, %v652
          %vm662 = vcmp.eq.s32.totalorder %v544, 13
          %663 = vset.pattern.permute.xlu0 2
          %664 = vperm.xlu0 %663, %v527
          %v665 = vpop.permute.xlu0 %664
          %666 = vset.pattern.permute.xlu0 2
          %667 = vperm.xlu0 %666, %v528
          %v668 = vpop.permute.xlu0 %667
          %v669 = vsel %vm662, %v665, %v660
          %v670 = vsel %vm662, %v668, %v661
          %vm671 = vcmp.eq.s32.totalorder %v544, 14
          %672 = vset.pattern.permute.xlu0 1
          %673 = vperm.xlu0 %672, %v527
          %v674 = vpop.permute.xlu0 %673
          %675 = vset.pattern.permute.xlu0 1
          %676 = vperm.xlu0 %675, %v528
          %v677 = vpop.permute.xlu0 %676
          %v678 = vsel %vm671, %v674, %v669
          %v679 = vsel %vm671, %v677, %v670
          %vm680 = vcmp.eq.s32.totalorder %v544, 15
          %681 = vset.pattern.permute.xlu0 0
          %682 = vperm.xlu0 %681, %v527
          %v683 = vpop.permute.xlu0 %682
          %684 = vset.pattern.permute.xlu0 0
          %685 = vperm.xlu0 %684, %v528
          %v686 = vpop.permute.xlu0 %685
          %v687 = vsel %vm680, %v683, %v678
          %v688 = vsel %vm680, %v686, %v679
          %vm689 = vcmask 130048
          %690 = vst.msk [vmem:[%s138] sm:$0xff] %vm689, %v687
          %691 = vst.msk [vmem:[%s138 + $0x8] sm:$0xff] %vm689, %v688
        $region44: #{tpu_custom_call.1} parent=23 // pred_fallthru
          _
        %s692 = sand.u32 %s54, 1
        %s693 = scalar_lea.sflag [#allocation6], %s692
        %s694 = sand.u32 %s54, 1
        %s695 = smul.addr %s694, 16
        %s696 = scalar_lea.vmem [#allocation7], %s695
        // Predicated region
        $region45: #{tpu_custom_call.1} parent=23 // pred_check
          %p697 = pneg %p64
        $region46: #{tpu_custom_call.1} parent=23 // pred_check_branch
          %699 = sbr.rel (%p697) target = $region48
        $region47: #{tpu_custom_call.1} parent=23 // pred_region
          %701 = vsyncadd %s693, 0
          %s702 = smul.addr %s20, 2
          %s703 = smul.addr %s702, 8
          %s704 = scalar_lea.hbm %s2, %s703
          %s705 = sshll.u32 %s696, 4
          %s706 = int_to_ptr.vmem [resolvable:$true] %s705
          %s707 = sshll.u32 %s704, 4
          %s708 = int_to_ptr.hbm [resolvable:$true] %s707
          %713 = dma.vmem_to_hbm [thread:$0]  %s706, 256, %s708, %s693, 128, 128, 8
        $region48: #{tpu_custom_call.1} parent=23 // pred_fallthru
          _
      $region24: #{tpu_custom_call.1} parent=5 // pred_fallthru
        _
      %p714 = scmp.le.s32.totalorder 2, %s15
      // Predicated region
      $region49: #{tpu_custom_call.1} parent=5 // pred_check
        %p715 = pneg %p714
      $region50: #{tpu_custom_call.1} parent=5 // pred_check_branch
        %717 = sbr.rel (%p715) target = $region52
      $region51: #{tpu_custom_call.1} parent=5 // pred_region
        %s718 = ssub.s32 %s15, 2
        // Predicated region
        $region53: #{tpu_custom_call.1} parent=51 // pred_check
          %p719 = pneg %p70
        $region54: #{tpu_custom_call.1} parent=51 // pred_check_branch
          %721 = sbr.rel (%p719) target = $region56
        $region55: #{tpu_custom_call.1} parent=51 // pred_region
          %s722 = sand.u32 %s55, 1
          %s723 = scalar_lea.sflag [#allocation6], %s722
          %s724 = sand.u32 %s55, 1
          %s725 = smul.addr %s724, 16
          %s726 = scalar_lea.vmem [#allocation7], %s725
          %728 = dma.done %s723, 256
        $region56: #{tpu_custom_call.1} parent=51 // pred_fallthru
          _
      $region52: #{tpu_custom_call.1} parent=5 // pred_fallthru
        _
    $region6: #{tpu_custom_call.1} parent=1 // loop_footer
      %s19 = sadd.s32 1, %s15
    $region7: #{tpu_custom_call.1} parent=1 // loop_footer_branch
      %14 = sbr.rel target = $region3
    $region8: #{tpu_custom_call.1} parent=1 // loop_exit
      _
    %729 = vsyncpa [#allocation5], 1
    %s730 = scalar_lea.sflag [#allocation5], 1
    %731 = vsyncpa %s730, 1
    %732 = vsyncpa [#allocation6], 1
    %s733 = scalar_lea.sflag [#allocation6], 1
    %734 = vsyncpa %s733, 1

</llo_original>
